<compile_context>
chip_gen: v7x
topology: tpu7x:2x2x1
jax: 0.10.0
libtpu: 0.0.40
codegen_flags: <defaults>
</compile_context>

<pallas_src>
import functools
import math

import jax
import jax.numpy as jnp
from jax.experimental import pallas as pl
from jax.experimental.pallas import tpu as pltpu

_MIB = 1024 * 1024


def _round_up(x, m):
    return ((x + m - 1) // m) * m


# --------------------------- TPU target detection -----------------------------

# gen -> (tm_target, tn_target, tk_target, lane_multiple)
_TILE_TARGETS = {
    "v5e": (512, 1024, 512, 128),
    "v6e": (1536, 2048, 512, 256),
    "v7x": (512, 1024, 512, 256),
}
_DEFAULT_VMEM_CAP = {"v5e": 128 * _MIB, "v6e": 128 * _MIB, "v7x": 64 * _MIB}


@functools.lru_cache(maxsize=1)
def _tpu_target():
    """Best-effort (generation, vmem_capacity_bytes) with safe fallbacks."""
    kind = ""
    try:
        kind = jax.devices()[0].device_kind.lower()
    except Exception:
        pass
    if "v7" in kind:
        gen = "v7x"
    elif "v6" in kind:
        gen = "v6e"
    else:
        # v5e / v5p / v4 / unknown: 128-wide MXU tiles, >= 128 MiB VMEM profile.
        gen = "v5e"
    vmem_cap = _DEFAULT_VMEM_CAP[gen]
    try:
        info = pltpu.get_tpu_info()
        cap = int(getattr(info, "vmem_capacity_bytes", 0))
        if cap > 0:
            vmem_cap = cap
    except Exception:
        pass
    return gen, vmem_cap


def _pick_nk_tiles(N, K):
    """N/K tile sizes (fixed at module init; generation aware)."""
    gen, _ = _tpu_target()
    _, tn_t, tk_t, lane = _TILE_TARGETS[gen]
    tn = min(_round_up(N, lane), tn_t)
    tk = min(_round_up(K, lane), tk_t)
    return tn, tk


def _pick_m_tile(M, compute_itemsize):
    """M tile size (depends on runtime batch; dtype-aware sublane rounding)."""
    gen, _ = _tpu_target()
    tm_t = _TILE_TARGETS[gen][0]
    # Minimum sublane multiple: 8 (f32), 16 (bf16), 32 (int8/fp8).
    m_mult = 8 * max(1, 4 // int(compute_itemsize))
    return min(_round_up(M, m_mult), tm_t)


def _vmem_limit_bytes(tm, tn, tk, in_itemsize, out_itemsize, has_bias):
    """1.5x the double-buffered per-step footprint, capped below physical VMEM."""
    _, vmem_cap = _tpu_target()
    x_tile = tm * tk * in_itemsize
    w_tile = tk * tn * in_itemsize
    b_tile = tn * 4 if has_bias else 0
    out_tile = tm * tn * out_itemsize
    acc = tm * tn * 4
    needed = 2 * (x_tile + w_tile + b_tile + out_tile) + acc
    ceiling = vmem_cap - 8 * _MIB  # leave headroom for Mosaic-internal scratch
    return int(max(min(int(needed * 1.5), ceiling), 4 * _MIB))


# ----------------------------- kernels ----------------------------------------


def _matmul_bias_kernel(x_ref, wt_ref, b_ref, o_ref, acc_ref):
    """One (.,.,k) grid step of Y = X @ W^T + b.

    Bias (f32) is folded into the accumulator init at k == 0; the epilogue
    only casts the f32 accumulator to the output dtype and stores.
    """
    k = pl.program_id(2)

    @pl.when(k == 0)
    def _():
        acc_ref[...] = jnp.broadcast_to(
            b_ref[...].astype(jnp.float32), acc_ref.shape
        )

    acc_ref[...] += jnp.dot(
        x_ref[...], wt_ref[...], preferred_element_type=jnp.float32
    )

    @pl.when(k == pl.num_programs(2) - 1)
    def _():
        o_ref[...] = acc_ref[...].astype(o_ref.dtype)


def _matmul_kernel(x_ref, wt_ref, o_ref, acc_ref):
    """One (.,.,k) grid step of Y = X @ W^T (no bias)."""
    k = pl.program_id(2)

    @pl.when(k == 0)
    def _():
        acc_ref[...] = jnp.zeros_like(acc_ref)

    acc_ref[...] += jnp.dot(
        x_ref[...], wt_ref[...], preferred_element_type=jnp.float32
    )

    @pl.when(k == pl.num_programs(2) - 1)
    def _():
        o_ref[...] = acc_ref[...].astype(o_ref.dtype)


# ----------------------------- wrapper -----------------------------------------


@functools.partial(
    jax.jit,
    static_argnames=("tm", "tn", "tk", "n_out", "compute_dtype", "out_dtype"),
)
def _row_linear_fwd(x, wt_pad, bias_row, *, tm, tn, tk, n_out, compute_dtype,
                    out_dtype):
    """x[..., K] @ wt_pad[K_pad, N_pad] (+ bias) -> [..., n_out] in out_dtype."""
    orig_shape = x.shape
    K = orig_shape[-1]
    M = math.prod(orig_shape[:-1])
    K_pad, N_pad = wt_pad.shape
    has_bias = bias_row is not None

    x2d = x.reshape(M, K).astype(compute_dtype)
    M_pad = _round_up(M, tm)
    if (M_pad, K_pad) != (M, K):
        x2d = jnp.pad(x2d, ((0, M_pad - M), (0, K_pad - K)))

    grid_m = M_pad // tm
    grid_n = N_pad // tn
    grid_k = K_pad // tk

    # Decode-like shapes (one M tile): put N first so the leading "parallel"
    # axis has extent >= 2 and work shards across both TCs on v7x.
    n_major = grid_m < grid_n
    if n_major:
        grid = (grid_n, grid_m, grid_k)
        x_map = lambda j, i, k: (i, k)
        w_map = lambda j, i, k: (k, j)
        b_map = lambda j, i, k: (0, j)
        o_map = lambda j, i, k: (i, j)
    else:
        grid = (grid_m, grid_n, grid_k)
        x_map = lambda i, j, k: (i, k)
        w_map = lambda i, j, k: (k, j)
        b_map = lambda i, j, k: (0, j)
        o_map = lambda i, j, k: (i, j)

    in_specs = [
        pl.BlockSpec((tm, tk), x_map),   # X tile
        pl.BlockSpec((tk, tn), w_map),   # W^T tile
    ]
    args = [x2d, wt_pad]
    if has_bias:
        in_specs.append(pl.BlockSpec((1, tn), b_map))  # bias row (f32)
        args.append(bias_row)
        kernel = _matmul_bias_kernel
    else:
        kernel = _matmul_kernel

    out = pl.pallas_call(
        kernel,
        out_shape=jax.ShapeDtypeStruct((M_pad, N_pad), out_dtype),
        grid_spec=pltpu.PrefetchScalarGridSpec(
            num_scalar_prefetch=0,
            grid=grid,
            in_specs=in_specs,
            out_specs=pl.BlockSpec((tm, tn), o_map),
            scratch_shapes=[pltpu.VMEM((tm, tn), jnp.float32)],
        ),
        compiler_params=pltpu.CompilerParams(
            dimension_semantics=("parallel", "parallel", "arbitrary"),
            vmem_limit_bytes=_vmem_limit_bytes(
                tm, tn, tk,
                jnp.dtype(compute_dtype).itemsize,
                jnp.dtype(out_dtype).itemsize,
                has_bias,
            ),
        ),
    )(*args)

    out = out[:M, :n_out]
    return out.reshape(*orig_shape[:-1], n_out)


# ----------------------------- module ------------------------------------------


class RowParallelLinear:
    """JAX/Pallas equivalent of Megatron's RowParallelLinear (world_size == 1)."""

    def __init__(
        self,
        input_size,
        output_size,
        bias=True,
        input_is_parallel=False,
        skip_bias_add=False,
        params_dtype=jnp.float32,
        compute_dtype=jnp.bfloat16,   # bf16 default: MXU-native, halves DMA bytes
        key=None,
    ):
        self.input_size = input_size
        self.output_size = output_size
        self.input_is_parallel = input_is_parallel
        self.skip_bias_add = skip_bias_add
        self.params_dtype = jnp.dtype(params_dtype)
        self.compute_dtype = jnp.dtype(
            compute_dtype if compute_dtype is not None else params_dtype
        )
        # world_size == 1 -> input_size_per_partition == input_size
        self.input_size_per_partition = input_size

        # N/K tiles fixed at init (generation aware) so the weight can be
        # padded exactly once.
        self._tn, self._tk = _pick_nk_tiles(output_size, input_size)
        self._n_pad = _round_up(output_size, self._tn)
        self._k_pad = _round_up(self.input_size_per_partition, self._tk)

        if key is None:
            key = jax.random.PRNGKey(0)
        # xavier_normal_: std = sqrt(2 / (fan_in + fan_out))
        std = math.sqrt(2.0 / (input_size + output_size))
        w = (
            jax.random.normal(key, (output_size, input_size), dtype=jnp.float32)
            * std
        ).astype(self.params_dtype)  # [out, in], PyTorch convention
        self._set_weight(w)

        if bias:
            self.bias = jnp.zeros((output_size,), dtype=self.params_dtype)
            self._bias_row = jnp.zeros((1, self._n_pad), dtype=jnp.float32)
        else:
            self.bias = None
            self._bias_row = None

    # -- parameter plumbing ------------------------------------------------

    def _set_weight(self, w):
        """Keep ONLY the transposed, compute-dtype, tile-padded weight resident."""
        w_t = jnp.asarray(w).T.astype(self.compute_dtype)  # [K, N]
        self._weight_t_pad = jnp.pad(
            w_t,
            ((0, self._k_pad - w_t.shape[0]), (0, self._n_pad - w_t.shape[1])),
        )

    @property
    def weight(self):
        """[out, in] view reconstructed lazily (testing / checkpointing only)."""
        w_t = self._weight_t_pad[: self.input_size_per_partition, : self.output_size]
        return w_t.T.astype(self.params_dtype)

    def set_bias(self, bias):
        """Helper (for testing): replace bias and rebuild the padded f32 row."""
        assert self.bias is not None
        b = jnp.asarray(bias).reshape(self.output_size).astype(self.params_dtype)
        self.bias = b
        # Bias enters the kernel as f32 so it is folded into the f32 accumulator
        # at full precision even when compute_dtype is bf16.
        self._bias_row = jnp.pad(
            b.astype(jnp.float32).reshape(1, -1),
            ((0, 0), (0, self._n_pad - self.output_size)),
        )

    # -- forward -------------------------------------------------------------

    def __call__(self, x):
        # scatter_to_tensor_model_parallel_region == identity (world_size == 1)
        assert x.shape[-1] == self.input_size_per_partition
        M = math.prod(x.shape[:-1])
        tm = _pick_m_tile(M, self.compute_dtype.itemsize)

        add_bias = (self.bias is not None) and (not self.skip_bias_add)
        bias_row = self._bias_row if add_bias else None

        output = _row_linear_fwd(
            x,
            self._weight_t_pad,
            bias_row,
            tm=tm,
            tn=self._tn,
            tk=self._tk,
            n_out=self.output_size,
            compute_dtype=self.compute_dtype,
            out_dtype=x.dtype,   # final dtype emitted directly by the kernel epilogue
        )

        # reduce_from_tensor_model_parallel_region == identity (world_size == 1)
        # TODO(synk): PowerSGD activation-compressed all-reduce (mp_acti_comp) is a
        # multi-device stateful collective with no single-device Pallas equivalent.
        output_bias = self.bias if self.skip_bias_add else None
        return output, output_bias


if __name__ == "__main__":
    key = jax.random.PRNGKey(0)
    k_w, k_x, k_b, k_w2, k_x2, k_b2 = jax.random.split(key, 6)

    # ---- case 1: fused bias, bf16 compute, f32 in/out, tile-aligned shapes ----
    batch, seq, input_size, output_size = 2, 8, 256, 128
    layer = RowParallelLinear(
        input_size, output_size, bias=True, skip_bias_add=False, key=k_w
    )
    layer.set_bias(jax.random.normal(k_b, (output_size,), dtype=jnp.float32))
    x = jax.random.normal(k_x, (batch, seq, input_size), dtype=jnp.float32)

    out, out_bias = layer(x)
    out = jax.block_until_ready(out)

    # Reference uses the same bf16-rounded operands the kernel consumes.
    x_c = x.astype(layer.compute_dtype).astype(jnp.float32)
    w_c = layer.weight.astype(jnp.float32)
    ref = (
        jnp.einsum("bsk,nk->bsn", x_c, w_c, precision=jax.lax.Precision.HIGHEST)
        + layer.bias
    )
    assert out.shape == (batch, seq, output_size)
    assert out.dtype == x.dtype
    assert out_bias is None
    assert jnp.allclose(out, ref, atol=5e-3, rtol=5e-3)

    # ---- case 2: skip_bias_add=True, ragged shapes (exercise padding path) ----
    batch2, seq2, in2, out2_sz = 3, 5, 200, 100
    layer2 = RowParallelLinear(
        in2, out2_sz, bias=True, skip_bias_add=True, key=k_w2
    )
    layer2.set_bias(jax.random.normal(k_b2, (out2_sz,), dtype=jnp.float32))
    x2 = jax.random.normal(k_x2, (batch2, seq2, in2), dtype=jnp.float32)

    out2, out_bias2 = layer2(x2)
    out2 = jax.block_until_ready(out2)

    x2_c = x2.astype(layer2.compute_dtype).astype(jnp.float32)
    w2_c = layer2.weight.astype(jnp.float32)
    ref2 = jnp.einsum(
        "bsk,nk->bsn", x2_c, w2_c, precision=jax.lax.Precision.HIGHEST
    )
    assert out2.shape == (batch2, seq2, out2_sz)
    assert out_bias2 is layer2.bias
    assert jnp.allclose(out2, ref2, atol=5e-3, rtol=5e-3)

    print("KERNEL_OK")
</pallas_src>

<mosaic_0001>
module attributes {stable_mosaic.version = 11 : i64} {
  func.func @_matmul_bias_kernel(%arg0: i32, %arg1: i32, %arg2: i32, %arg3: memref<16x256xbf16, #tpu.memory_space<vmem>>, %arg4: memref<256x128xbf16, #tpu.memory_space<vmem>>, %arg5: memref<1x128xf32, #tpu.memory_space<vmem>>, %arg6: memref<16x128xf32, #tpu.memory_space<vmem>>, %arg7: memref<16x128xf32, #tpu.memory_space<vmem>>) attributes {dimension_semantics = [#tpu.dimension_semantics<parallel>, #tpu.dimension_semantics<parallel>, #tpu.dimension_semantics<arbitrary>], iteration_bounds = array<i64: 1, 1, 1>, scalar_prefetch = 0 : i64, scratch_operands = 1 : i64, tpu.core_type = #tpu.core_type<tc>, window_params = [{transform_indices = @transform_0, window_bounds = array<i64: 16, 256>}, {transform_indices = @transform_1, window_bounds = array<i64: 256, 128>}, {transform_indices = @transform_2, window_bounds = array<i64: 1, 128>}, {transform_indices = @transform_3, window_bounds = array<i64: 16, 128>}]} {
    %c0_i32 = arith.constant 0 : i32
    %0 = arith.cmpi eq, %arg2, %c0_i32 : i32
    %1 = arith.extui %0 : i1 to i32
    %c0_i32_0 = arith.constant 0 : i32
    %2 = arith.cmpi ne, %1, %c0_i32_0 : i32
    scf.if %2 {
      %c0_10 = arith.constant 0 : index
      %c0_11 = arith.constant 0 : index
      %12 = vector.load %arg5[%c0_10, %c0_11] : memref<1x128xf32, #tpu.memory_space<vmem>>, vector<1x128xf32>
      %13 = vector.shape_cast %12 : vector<1x128xf32> to vector<1x128xf32>
      %14 = vector.broadcast %13 : vector<1x128xf32> to vector<16x128xf32>
      %c0_12 = arith.constant 0 : index
      %c0_13 = arith.constant 0 : index
      %15 = vector.load %arg7[%c0_12, %c0_13] : memref<16x128xf32, #tpu.memory_space<vmem>>, vector<16x128xf32>
      tpu.vector_store %arg7[%c0_12, %c0_13], %14 {strides = array<i32>} : memref<16x128xf32, #tpu.memory_space<vmem>>, vector<16x128xf32>,
    } else {
    }
    %c0 = arith.constant 0 : index
    %c0_1 = arith.constant 0 : index
    %3 = vector.load %arg7[%c0, %c0_1] : memref<16x128xf32, #tpu.memory_space<vmem>>, vector<16x128xf32>
    %c0_2 = arith.constant 0 : index
    %c0_3 = arith.constant 0 : index
    %4 = vector.load %arg3[%c0_2, %c0_3] : memref<16x256xbf16, #tpu.memory_space<vmem>>, vector<16x256xbf16>
    %c0_4 = arith.constant 0 : index
    %c0_5 = arith.constant 0 : index
    %5 = vector.load %arg4[%c0_4, %c0_5] : memref<256x128xbf16, #tpu.memory_space<vmem>>, vector<256x128xbf16>
    %cst = arith.constant dense<0.000000e+00> : vector<16x128xf32>
    %6 = tpu.matmul %4, %5, %cst {dimension_numbers = #tpu.dot_dimension_numbers<[1], [0], [0], [1], [0, 0, 1, 1], [], []>} : vector<16x256xbf16>, vector<256x128xbf16>, vector<16x128xf32> -> vector<16x128xf32>
    %7 = arith.addf %3, %6 : vector<16x128xf32>
    %c0_6 = arith.constant 0 : index
    %c0_7 = arith.constant 0 : index
    %8 = vector.load %arg7[%c0_6, %c0_7] : memref<16x128xf32, #tpu.memory_space<vmem>>, vector<16x128xf32>
    tpu.vector_store %arg7[%c0_6, %c0_7], %7 {strides = array<i32>} : memref<16x128xf32, #tpu.memory_space<vmem>>, vector<16x128xf32>,
    %c0_i32_8 = arith.constant 0 : i32
    %9 = arith.cmpi eq, %arg2, %c0_i32_8 : i32
    %10 = arith.extui %9 : i1 to i32
    %c0_i32_9 = arith.constant 0 : i32
    %11 = arith.cmpi ne, %10, %c0_i32_9 : i32
    scf.if %11 {
      %c0_10 = arith.constant 0 : index
      %c0_11 = arith.constant 0 : index
      %12 = vector.load %arg7[%c0_10, %c0_11] : memref<16x128xf32, #tpu.memory_space<vmem>>, vector<16x128xf32>
      %c0_12 = arith.constant 0 : index
      %c0_13 = arith.constant 0 : index
      %13 = vector.load %arg6[%c0_12, %c0_13] : memref<16x128xf32, #tpu.memory_space<vmem>>, vector<16x128xf32>
      tpu.vector_store %arg6[%c0_12, %c0_13], %12 {strides = array<i32>} : memref<16x128xf32, #tpu.memory_space<vmem>>, vector<16x128xf32>,
    } else {
    }
    return
  }
  func.func @transform_0(%arg0: i32, %arg1: i32, %arg2: i32) -> (i32, i32) {
    %c0_i32 = arith.constant 0 : i32
    return %arg0, %arg2 : i32, i32
  }
  func.func @transform_1(%arg0: i32, %arg1: i32, %arg2: i32) -> (i32, i32) {
    %c0_i32 = arith.constant 0 : i32
    return %arg2, %arg1 : i32, i32
  }
  func.func @transform_2(%arg0: i32, %arg1: i32, %arg2: i32) -> (i32, i32) {
    %c0_i32 = arith.constant 0 : i32
    %c0_i32_0 = arith.constant 0 : i32
    return %c0_i32, %arg1 : i32, i32
  }
  func.func @transform_3(%arg0: i32, %arg1: i32, %arg2: i32) -> (i32, i32) {
    %c0_i32 = arith.constant 0 : i32
    return %arg0, %arg1 : i32, i32
  }
}

</mosaic_0001>

<llo_original>
// kernel: _row_linear_fwd.1
$region0: #{_row_linear_fwd.1}
  #allocation0 [shape = 'u32[]', space=smem, size = 0x4, offset = 0x4, fixed_abs, tag = 'smem constant byte address 0x4 - core index']
  #allocation1 [shape = 'u32[144,128]{1,0:T(1,128)}', space=vmem, size = 0x12000, scoped, tag = 'internal scratch']
  #allocation2 [shape = 'f32[16,128]{1,0:T(8,128)}', space=vmem, size = 0x2000, scoped, tag = 'scratch operand']
  %s0 = inlined_call_operand.vmem [shape: bf16[16,256], index: 0, kind: input, shape index: {}]
  %s1 = inlined_call_operand.hbm [shape: bf16[256,128], index: 1, kind: input, shape index: {}]
  %s2 = inlined_call_operand.vmem [shape: f32[1,128], index: 2, kind: input, shape index: {}]
  %s3 = inlined_call_operand.hbm [shape: f32[16,128], index: 3, kind: output, shape index: {}]
  %s4 = sld [smem:[#allocation0]]
  $region34: #{_row_linear_fwd.1} parent=0
    _
  %s6 = ssub.s32 1, %s4
  %s7 = scalar_select 0, %s6, %s4
  $region1: #{_row_linear_fwd.1} parent=0
    #allocation3 [shape = 'u8[65536]{0}', space=vmem, size = 0x10000, scoped, tag = 'input window, operand 1, single buffered']
    #allocation4 [shape = 's32[1]{0}', space=sflag, size = 0x4, scoped, tag = 'scoped memory for _row_linear_fwd.1']
    #allocation5 [shape = 's32[1]{0}', space=sflag, size = 0x4, scoped, tag = 'scoped memory for _row_linear_fwd.1']
    #allocation6 [shape = 'u8[8192]{0}', space=vmem, size = 0x2000, scoped, tag = 'output window, operand 0, single buffered']
    %8 = vsyncpa [#allocation4], 0
    %9 = vsyncpa [#allocation5], 0
    // Predicated region
    $region2: #{_row_linear_fwd.1} parent=1 // pred_check
      _
    $region3: #{_row_linear_fwd.1} parent=1 // pred_check_branch
      %11 = sbr.rel (0) target = $region5
    $region4: #{_row_linear_fwd.1} parent=1 // pred_region
      _
    $region5: #{_row_linear_fwd.1} parent=1 // pred_fallthru
      _
    // Predicated region
    $region6: #{_row_linear_fwd.1} parent=1 // pred_check
      _
    $region7: #{_row_linear_fwd.1} parent=1 // pred_check_branch
      %13 = sbr.rel (0) target = $region9
    $region8: #{_row_linear_fwd.1} parent=1 // pred_region
      %s15 = ssub.s32 2048, 2048
      %16 = vsyncadd [#allocation4], %s15
      %s17 = sshll.u32 [#allocation3], 4
      %s18 = int_to_ptr.vmem [resolvable:$true] %s17
      %23 = dma.hbm_to_vmem [thread:$0]  %s1, 2048, %s18, [#allocation4], 64, 64, 4
    $region9: #{_row_linear_fwd.1} parent=1 // pred_fallthru
      _
    // Predicated region
    $region10: #{_row_linear_fwd.1} parent=1 // pred_check
      _
    $region11: #{_row_linear_fwd.1} parent=1 // pred_check_branch
      %25 = sbr.rel (0) target = $region13
    $region12: #{_row_linear_fwd.1} parent=1 // pred_region
      _
    $region13: #{_row_linear_fwd.1} parent=1 // pred_fallthru
      _
    // Predicated region
    $region14: #{_row_linear_fwd.1} parent=1 // pred_check
      _
    $region15: #{_row_linear_fwd.1} parent=1 // pred_check_branch
      %27 = sbr.rel (0) target = $region17
    $region16: #{_row_linear_fwd.1} parent=1 // pred_region
      %28 = dma.done [#allocation4], 2048
    $region17: #{_row_linear_fwd.1} parent=1 // pred_fallthru
      _
    %p30 = scmp.eq.s32.totalorder 0, 0
    // Predicated region
    $region18: #{_row_linear_fwd.1} parent=1 // pred_check
      %p31 = pneg %p30
    $region19: #{_row_linear_fwd.1} parent=1 // pred_check_branch
      %33 = sbr.rel (%p31) target = $region21
    $region20: #{_row_linear_fwd.1} parent=1 // pred_region
      %v34 = vld [vmem:[%s2] sm:$0x1]
      %v36 = vlaneseq
      %v37 = vshrl.u32 %v36, 7
      %v38 = vsub.s32 0, %v37
      %v39 = vrot.slane %v34, %v38
      %41 = vst [vmem:[#allocation2] sm:$0xff] %v39
      %42 = vst [vmem:[#allocation2 + $0x8] sm:$0xff] %v39
    $region21: #{_row_linear_fwd.1} parent=1 // pred_fallthru
      _
    %v43 = vld [vmem:[#allocation2] sm:$0xff]
    %v44 = vld [vmem:[#allocation2 + $0x8] sm:$0xff]
    %v45 = vld [vmem:[%s0] sm:$0xff]
    %v46 = vld [vmem:[%s0 + $0x8] sm:$0xff]
    %v47 = vld [vmem:[#allocation3] sm:$0xf]
    %v48 = vld [vmem:[#allocation3 + $0x4] sm:$0xf]
    %v49 = vld [vmem:[#allocation3 + $0x8] sm:$0xf]
    %v50 = vld [vmem:[#allocation3 + $0xc] sm:$0xf]
    %v51 = vld [vmem:[#allocation3 + $0x10] sm:$0xf]
    %v52 = vld [vmem:[#allocation3 + $0x14] sm:$0xf]
    %v53 = vld [vmem:[#allocation3 + $0x18] sm:$0xf]
    %v54 = vld [vmem:[#allocation3 + $0x1c] sm:$0xf]
    %v55 = vld [vmem:[#allocation3 + $0x20] sm:$0xf]
    %v56 = vld [vmem:[#allocation3 + $0x24] sm:$0xf]
    %v57 = vld [vmem:[#allocation3 + $0x28] sm:$0xf]
    %v58 = vld [vmem:[#allocation3 + $0x2c] sm:$0xf]
    %v59 = vld [vmem:[#allocation3 + $0x30] sm:$0xf]
    %v60 = vld [vmem:[#allocation3 + $0x34] sm:$0xf]
    %v61 = vld [vmem:[#allocation3 + $0x38] sm:$0xf]
    %v62 = vld [vmem:[#allocation3 + $0x3c] sm:$0xf]
    %v63 = vld [vmem:[#allocation3 + $0x40] sm:$0xf]
    %v64 = vld [vmem:[#allocation3 + $0x44] sm:$0xf]
    %v65 = vld [vmem:[#allocation3 + $0x48] sm:$0xf]
    %v66 = vld [vmem:[#allocation3 + $0x4c] sm:$0xf]
    %v67 = vld [vmem:[#allocation3 + $0x50] sm:$0xf]
    %v68 = vld [vmem:[#allocation3 + $0x54] sm:$0xf]
    %v69 = vld [vmem:[#allocation3 + $0x58] sm:$0xf]
    %v70 = vld [vmem:[#allocation3 + $0x5c] sm:$0xf]
    %v71 = vld [vmem:[#allocation3 + $0x60] sm:$0xf]
    %v72 = vld [vmem:[#allocation3 + $0x64] sm:$0xf]
    %v73 = vld [vmem:[#allocation3 + $0x68] sm:$0xf]
    %v74 = vld [vmem:[#allocation3 + $0x6c] sm:$0xf]
    %v75 = vld [vmem:[#allocation3 + $0x70] sm:$0xf]
    %v76 = vld [vmem:[#allocation3 + $0x74] sm:$0xf]
    %v77 = vld [vmem:[#allocation3 + $0x78] sm:$0xf]
    %v78 = vld [vmem:[#allocation3 + $0x7c] sm:$0xf]
    %v81 = vunpack.c.l.b16 %v45
    %v82 = vunpack.c.h.b16 %v45
    %v83 = vunpack.c.l.b16 %v46
    %v84 = vunpack.c.h.b16 %v46
    %v85 = vpack.c.b16 %v83, %v81
    %v86 = vpack.c.b16 %v84, %v82
    %v121 = vunpack.c.l.b16 %v47
    %v122 = vunpack.c.l.b16 %v48
    %v123 = vunpack.c.l.b16 %v49
    %v124 = vunpack.c.l.b16 %v50
    %v125 = vunpack.c.l.b16 %v51
    %v126 = vunpack.c.l.b16 %v52
    %v127 = vunpack.c.l.b16 %v53
    %v128 = vunpack.c.l.b16 %v54
    %v129 = vunpack.c.l.b16 %v55
    %v130 = vunpack.c.l.b16 %v56
    %v131 = vunpack.c.l.b16 %v57
    %v132 = vunpack.c.l.b16 %v58
    %v133 = vunpack.c.l.b16 %v59
    %v134 = vunpack.c.l.b16 %v60
    %v135 = vunpack.c.l.b16 %v61
    %v136 = vunpack.c.l.b16 %v62
    %v137 = vunpack.c.l.b16 %v63
    %v138 = vunpack.c.l.b16 %v64
    %v139 = vunpack.c.l.b16 %v65
    %v140 = vunpack.c.l.b16 %v66
    %v141 = vunpack.c.l.b16 %v67
    %v142 = vunpack.c.l.b16 %v68
    %v143 = vunpack.c.l.b16 %v69
    %v144 = vunpack.c.l.b16 %v70
    %v145 = vunpack.c.l.b16 %v71
    %v146 = vunpack.c.l.b16 %v72
    %v147 = vunpack.c.l.b16 %v73
    %v148 = vunpack.c.l.b16 %v74
    %v149 = vunpack.c.l.b16 %v75
    %v150 = vunpack.c.l.b16 %v76
    %v151 = vunpack.c.l.b16 %v77
    %v152 = vunpack.c.l.b16 %v78
    %v153 = vpack.c.b16 %v122, %v121
    %v154 = vpack.c.b16 %v124, %v123
    %v155 = vpack.c.b16 %v126, %v125
    %v156 = vpack.c.b16 %v128, %v127
    %v157 = vpack.c.b16 %v130, %v129
    %v158 = vpack.c.b16 %v132, %v131
    %v159 = vpack.c.b16 %v134, %v133
    %v160 = vpack.c.b16 %v136, %v135
    %v161 = vpack.c.b16 %v138, %v137
    %v162 = vpack.c.b16 %v140, %v139
    %v163 = vpack.c.b16 %v142, %v141
    %v164 = vpack.c.b16 %v144, %v143
    %v165 = vpack.c.b16 %v146, %v145
    %v166 = vpack.c.b16 %v148, %v147
    %v167 = vpack.c.b16 %v150, %v149
    %v168 = vpack.c.b16 %v152, %v151
    %185 = vmatprep.subr.bf16.mxu0 0
    %186 = vmatpush1.bf16.msra.mxu0 %v153
    %187 = vmatprep.subr.bf16.mxu0 0
    %188 = vmatpush1.bf16.msra.mxu0 %v154
    %189 = vmatprep.subr.bf16.mxu0 0
    %190 = vmatpush1.bf16.msra.mxu0 %v155
    %191 = vmatprep.subr.bf16.mxu0 0
    %192 = vmatpush1.bf16.msra.mxu0 %v156
    %193 = vmatprep.subr.bf16.mxu0 0
    %194 = vmatpush1.bf16.msra.mxu0 %v157
    %195 = vmatprep.subr.bf16.mxu0 0
    %196 = vmatpush1.bf16.msra.mxu0 %v158
    %197 = vmatprep.subr.bf16.mxu0 0
    %198 = vmatpush1.bf16.msra.mxu0 %v159
    %199 = vmatprep.subr.bf16.mxu0 0
    %200 = vmatpush1.bf16.msra.mxu0 %v160
    %201 = vmatprep.subr.bf16.mxu0 0
    %202 = vmatpush1.bf16.msra.mxu0 %v161
    %203 = vmatprep.subr.bf16.mxu0 0
    %204 = vmatpush1.bf16.msra.mxu0 %v162
    %205 = vmatprep.subr.bf16.mxu0 0
    %206 = vmatpush1.bf16.msra.mxu0 %v163
    %207 = vmatprep.subr.bf16.mxu0 0
    %208 = vmatpush1.bf16.msra.mxu0 %v164
    %209 = vmatprep.subr.bf16.mxu0 0
    %210 = vmatpush1.bf16.msra.mxu0 %v165
    %211 = vmatprep.subr.bf16.mxu0 0
    %212 = vmatpush1.bf16.msra.mxu0 %v166
    %213 = vmatprep.subr.bf16.mxu0 0
    %214 = vmatpush1.bf16.msra.mxu0 %v167
    %215 = vmatprep.subr.bf16.mxu0 0
    %216 = vmatpush1.bf16.msra.mxu0 %v168
    %217 = vmatprep.mubr.bf16.mxu0 %v86
    %218 = vmatmul.mubr.bf16.gmra.mrb[0].mxu0 %v85
    %v219 = vpop.f32.mrb[0].mxu0
    %v220 = vadd.f32 0.0, %v219
    %v221 = vpop.f32.mrb[0].mxu0
    %v222 = vpop.f32.mrb[0].mxu0
    %v223 = vadd.f32 0.0, %v222
    %v224 = vpop.f32.mrb[0].mxu0
    %225 = vdwg.mxu0
    %v226 = vadd.f32 %v43, %v220
    %v227 = vadd.f32 %v44, %v223
    %228 = vst [vmem:[#allocation2] sm:$0xff] %v226
    %229 = vst [vmem:[#allocation2 + $0x8] sm:$0xff] %v227
    // Predicated region
    $region22: #{_row_linear_fwd.1} parent=1 // pred_check
      %p230 = pneg %p30
    $region23: #{_row_linear_fwd.1} parent=1 // pred_check_branch
      %232 = sbr.rel (%p230) target = $region25
    $region24: #{_row_linear_fwd.1} parent=1 // pred_region
      %v233 = vld [vmem:[#allocation2] sm:$0xff]
      %v234 = vld [vmem:[#allocation2 + $0x8] sm:$0xff]
      %235 = vst [vmem:[#allocation6] sm:$0xff] %v233
      %236 = vst [vmem:[#allocation6 + $0x8] sm:$0xff] %v234
    $region25: #{_row_linear_fwd.1} parent=1 // pred_fallthru
      _
    // Predicated region
    $region26: #{_row_linear_fwd.1} parent=1 // pred_check
      _
    $region27: #{_row_linear_fwd.1} parent=1 // pred_check_branch
      %238 = sbr.rel (0) target = $region29
    $region28: #{_row_linear_fwd.1} parent=1 // pred_region
      %s240 = ssub.s32 256, 256
      %241 = vsyncadd [#allocation5], %s240
      %s242 = sshll.u32 [#allocation6], 4
      %s243 = int_to_ptr.vmem [resolvable:$true] %s242
      %248 = dma.vmem_to_hbm [thread:$0]  %s243, 256, %s3, [#allocation5], 128, 128, 8
    $region29: #{_row_linear_fwd.1} parent=1 // pred_fallthru
      _
    // Predicated region
    $region30: #{_row_linear_fwd.1} parent=1 // pred_check
      _
    $region31: #{_row_linear_fwd.1} parent=1 // pred_check_branch
      %250 = sbr.rel (0) target = $region33
    $region32: #{_row_linear_fwd.1} parent=1 // pred_region
      %251 = dma.done [#allocation5], 256
    $region33: #{_row_linear_fwd.1} parent=1 // pred_fallthru
      _
    %252 = vsyncpa [#allocation4], 1
    %253 = vsyncpa [#allocation5], 1

</llo_original>
